<compile_context>
chip_gen: v5e
topology: v5e:2x2
jax: 0.10.0
libtpu: 0.0.40
codegen_flags: <defaults>
</compile_context>

<pallas_src>
import functools
import math

import jax
import jax.numpy as jnp
from jax import lax
from jax.experimental import pallas as pl
from jax.experimental.pallas import tpu as pltpu


# ---------------------------------------------------------------------------
# Small helpers
# ---------------------------------------------------------------------------
def _s32(v):
    """Map an unsigned 32-bit Python int to its signed-int32 value."""
    v &= 0xFFFFFFFF
    return v - (1 << 32) if v >= (1 << 31) else v


def _srl(z, n):
    """Logical (unsigned) right shift for int32 arrays; Mosaic/interp safe."""
    return lax.shift_right_logical(z, jnp.full(z.shape, n, z.dtype))


def _round_up(n, m):
    return ((n + m - 1) // m) * m


# ---------------------------------------------------------------------------
# Kernel
# ---------------------------------------------------------------------------
def _ffn_kernel(seed_ref, x_ref, w1_ref, b1_ref, w2_ref, b2_ref, o_ref, acc_ref,
                *, apply_dropout, dropout_rate):
    """Grid = (row tiles, d_ff tiles).  Per step:
         h_blk = relu(x_tile @ W1_blk + b1_blk)           (MXU + VPU, f32)
         h_blk = dropout(h_blk)                            (hash-based mask)
         acc  += h_blk @ W2_blk                            (MXU, f32 acc)
       At the last d_ff tile: o = (acc + b2).astype(out dtype).
       The (tile_rows, d_ff) hidden activation never touches HBM."""
    k = pl.program_id(1)

    @pl.when(k == 0)
    def _init():
        acc_ref[...] = jnp.zeros_like(acc_ref)

    mm_dtype = w1_ref.dtype                    # bf16 by default (MXU native)
    x = x_ref[...].astype(mm_dtype)

    # First linear (block of d_ff columns) on the MXU, f32 accumulation.
    h = jnp.dot(x, w1_ref[...], preferred_element_type=jnp.float32)
    h = h + b1_ref[...].astype(jnp.float32)    # (1, tk) broadcast
    h = jnp.maximum(h, 0.0)                    # ReLU on the VPU

    if apply_dropout:
        # Counter-based inverted dropout: hash(global_row, global_col, seed)
        # -> uniform 32-bit value; drop the lowest `p` fraction.  Deterministic
        # and independent of the chosen tiling.
        # TODO(synk): distributionally equivalent to torch.nn.Dropout but not
        # bit-identical to torch's RNG stream.
        tr, tk = h.shape
        row = lax.broadcasted_iota(jnp.int32, (tr, tk), 0) + pl.program_id(0) * tr
        col = lax.broadcasted_iota(jnp.int32, (tr, tk), 1) + k * tk
        seed = seed_ref[0]
        z = row * jnp.int32(_s32(0x9E3779B9)) + col * jnp.int32(_s32(0x85EBCA6B))
        z = z ^ (seed * jnp.int32(_s32(0xC2B2AE3D)))
        z = (z ^ _srl(z, 16)) * jnp.int32(_s32(0x7FEB352D))
        z = (z ^ _srl(z, 15)) * jnp.int32(_s32(0x846CA68B))
        z = z ^ _srl(z, 16)
        # Uniform over signed int32 range; drop prob p  <=>  z < thr.
        thr = jnp.int32(int(round(dropout_rate * (1 << 32))) - (1 << 31))
        keep = z >= thr
        h = jnp.where(keep, h * jnp.float32(1.0 / (1.0 - dropout_rate)), 0.0)

    # Second linear block on the MXU, accumulated into the f32 VMEM scratch.
    acc_ref[...] += jnp.dot(h.astype(w2_ref.dtype), w2_ref[...],
                            preferred_element_type=jnp.float32)

    @pl.when(k == pl.num_programs(1) - 1)
    def _finalize():
        o_ref[...] = (acc_ref[...] + b2_ref[...].astype(jnp.float32)).astype(o_ref.dtype)


# ---------------------------------------------------------------------------
# Tiling heuristics (generation aware)
# ---------------------------------------------------------------------------
def _vmem_capacity_bytes():
    try:
        if jax.devices()[0].platform == "tpu":
            cap = getattr(pltpu.get_tpu_info(), "vmem_capacity_bytes", None)
            if cap:
                return int(cap)
    except Exception:
        pass
    return 64 * 1024 * 1024   # conservative default = v7x per-TC VMEM


def _choose_tiles(rows, d_model, d_ff, act_bytes, w_bytes, budget_bytes):
    """Pick (tile_rows, tile_k) under a VMEM budget.

    Per review: keep the row tile >= 256 (MXU M dim) and shrink the d_ff tile
    first.  tile_k must divide d_ff so the reduction axis never sees a partial
    (garbage) block; the row axis tolerates a ragged last block.
    """
    max_rows = min(1024, _round_up(rows, 8))

    if d_ff % 128 == 0:
        k_cands = [t for t in range(d_ff, 0, -128) if d_ff % t == 0]
    else:
        k_cands = [d_ff]      # single (full) d_ff block

    def footprint(tr, tk):
        return (2 * tr * d_model * act_bytes        # double-buffered x tile
                + 2 * tr * d_model * act_bytes      # double-buffered out tile
                + 2 * d_model * tk * w_bytes        # double-buffered W1 block
                + 2 * tk * d_model * w_bytes        # double-buffered W2 block
                + 2 * (tk + d_model) * w_bytes      # bias blocks
                + tr * d_model * 4                  # f32 accumulator scratch
                + 3 * tr * tk * 4)                  # f32 hidden + dropout temps

    target_rows = min(256, max_rows)
    tile_k = k_cands[0]
    for tk in k_cands:
        tile_k = tk
        if footprint(target_rows, tk) <= budget_bytes:
            break

    tile_rows = target_rows
    for cand in (512, 1024):
        c = min(cand, max_rows)
        if c > tile_rows and footprint(c, tile_k) <= budget_bytes:
            tile_rows = c
    while tile_rows > 8 and footprint(tile_rows, tile_k) > budget_bytes:
        tile_rows = max(8, tile_rows // 2)
    tile_rows = max(8, (tile_rows // 8) * 8)        # sublane alignment
    return int(tile_rows), int(tile_k)


# ---------------------------------------------------------------------------
# Wrapper
# ---------------------------------------------------------------------------
def positionwise_ffn(x, w1, b1, w2, b2, *, dropout_rate=0.0, seed=0,
                     tile_rows=None, tile_k=None):
    orig_shape = x.shape
    d_model = orig_shape[-1]
    d_ff = w1.shape[-1]
    assert w1.shape == (d_model, d_ff)
    assert w2.shape == (d_ff, d_model)

    apply_dropout = float(dropout_rate) > 0.0
    if apply_dropout and not (float(dropout_rate) < 1.0):
        raise ValueError("dropout_rate must be < 1.0")

    rows = int(math.prod(orig_shape[:-1])) if len(orig_shape) > 1 else 1
    x2 = x.reshape(rows, d_model)                 # view-like reshape, no HBM copy
    b1_2 = b1.reshape(1, d_ff)
    b2_2 = b2.reshape(1, d_model)

    cap = _vmem_capacity_bytes()
    budget = int(cap * 0.70)
    vmem_limit = int(cap * 0.85)

    act_bytes = jnp.dtype(x.dtype).itemsize
    w_bytes = jnp.dtype(w1.dtype).itemsize
    auto_rows, auto_k = _choose_tiles(rows, d_model, d_ff, act_bytes, w_bytes, budget)
    if tile_rows is None:
        tile_rows = auto_rows
    if tile_k is None:
        tile_k = auto_k
    assert d_ff % tile_k == 0, "d_ff tile must divide d_ff (reduction axis)"

    n_rows = pl.cdiv(rows, tile_rows)             # ragged last row tile is OK
    n_k = d_ff // tile_k

    seed_arr = jnp.asarray([int(seed)], dtype=jnp.int32)   # SMEM scalar prefetch

    kern = functools.partial(_ffn_kernel,
                             apply_dropout=apply_dropout,
                             dropout_rate=float(dropout_rate))

    out = pl.pallas_call(
        kern,
        out_shape=jax.ShapeDtypeStruct((rows, d_model), x.dtype),
        grid_spec=pltpu.PrefetchScalarGridSpec(
            num_scalar_prefetch=1,
            grid=(n_rows, n_k),
            in_specs=[
                # Activations: row tiles, constant across k (fetched once per i).
                pl.BlockSpec((tile_rows, d_model), lambda i, k, s: (i, 0)),
                # Weights / biases streamed along the d_ff axis.
                pl.BlockSpec((d_model, tile_k), lambda i, k, s: (0, k)),
                pl.BlockSpec((1, tile_k), lambda i, k, s: (0, k)),
                pl.BlockSpec((tile_k, d_model), lambda i, k, s: (k, 0)),
                pl.BlockSpec((1, d_model), lambda i, k, s: (0, 0)),
            ],
            out_specs=pl.BlockSpec((tile_rows, d_model), lambda i, k, s: (i, 0)),
            scratch_shapes=[pltpu.VMEM((tile_rows, d_model), jnp.float32)],
        ),
        compiler_params=pltpu.CompilerParams(
            # Row tiles independent -> megacore sharding on v7x; d_ff axis is a
            # reduction -> arbitrary.
            dimension_semantics=("parallel", "arbitrary"),
            vmem_limit_bytes=vmem_limit,
        ),
    )(seed_arr, x2, w1, b1_2, w2, b2_2)

    return out.reshape(orig_shape)


# ---------------------------------------------------------------------------
# Module port
# ---------------------------------------------------------------------------
class PositionwiseFeedForward:
    """JAX/Pallas port of the PyTorch PositionwiseFeedForward module.

    Weights are stored in bf16 (MXU-native, halves weight DMA + VMEM) with f32
    accumulation inside the kernel; biases stay f32.  W1 is (d_model, d_ff) and
    W2 is (d_ff, d_model) — already transposed relative to torch's (out, in)
    layout, so transpose when importing a PyTorch checkpoint.
    Init follows nn.Linear's default U(-1/sqrt(fan_in), +1/sqrt(fan_in)).
    """

    def __init__(self, d_model, d_ff, dropout=0.1, *, param_dtype=jnp.bfloat16,
                 key=None):
        if key is None:
            key = jax.random.PRNGKey(0)
        k1, k2, k3, k4 = jax.random.split(key, 4)
        lim1 = 1.0 / math.sqrt(d_model)
        lim2 = 1.0 / math.sqrt(d_ff)
        self.w1 = jax.random.uniform(k1, (d_model, d_ff), jnp.float32,
                                     -lim1, lim1).astype(param_dtype)
        self.b1 = jax.random.uniform(k2, (d_ff,), jnp.float32, -lim1, lim1)
        self.w2 = jax.random.uniform(k3, (d_ff, d_model), jnp.float32,
                                     -lim2, lim2).astype(param_dtype)
        self.b2 = jax.random.uniform(k4, (d_model,), jnp.float32, -lim2, lim2)
        self.dropout = float(dropout)

    def __call__(self, x, *, training=False, dropout_seed=0):
        rate = self.dropout if training else 0.0    # eval mode: dropout = identity
        return positionwise_ffn(x, self.w1, self.b1, self.w2, self.b2,
                                dropout_rate=rate, seed=dropout_seed)


def _reference_ffn(x, w1, b1, w2, b2):
    """Pure-JAX reference using the same (possibly bf16) stored parameters."""
    cd = w1.dtype
    h = jnp.dot(x.astype(cd).astype(jnp.float32), w1.astype(jnp.float32),
                precision=jax.lax.Precision.HIGHEST) + b1.astype(jnp.float32)
    h = jnp.maximum(h, 0.0)
    y = jnp.dot(h.astype(cd).astype(jnp.float32), w2.astype(jnp.float32),
                precision=jax.lax.Precision.HIGHEST) + b2.astype(jnp.float32)
    return y.astype(x.dtype)


# ---------------------------------------------------------------------------
# Main
# ---------------------------------------------------------------------------
if __name__ == "__main__":
    key = jax.random.PRNGKey(0)
    kx, kparams = jax.random.split(key)

    # Small but lane-dense shapes (d_model, d_ff multiples of 128).
    B, S, D_MODEL, D_FF = 2, 8, 128, 512
    x = jax.random.normal(kx, (B, S, D_MODEL), dtype=jnp.float32)

    ffn = PositionwiseFeedForward(D_MODEL, D_FF, dropout=0.1, key=kparams)

    # Eval-mode forward (dropout identity, as in module.eval()).
    out = jax.block_until_ready(ffn(x))
    ref = _reference_ffn(x, ffn.w1, ffn.b1, ffn.w2, ffn.b2)
    assert out.shape == x.shape and out.dtype == x.dtype
    max_err = float(jnp.max(jnp.abs(out - ref)))
    assert max_err < 2e-2, max_err

    # Training-mode forward exercises the fused dropout path.
    out_train = jax.block_until_ready(ffn(x, training=True, dropout_seed=123))
    assert out_train.shape == x.shape
    assert bool(jnp.all(jnp.isfinite(out_train)))
    assert not bool(jnp.allclose(out_train, out, atol=1e-6))

    print("KERNEL_OK")
</pallas_src>

<mosaic_0001>
module attributes {stable_mosaic.version = 11 : i64} {
  func.func @_ffn_kernel(%arg0: i32, %arg1: i32, %arg2: memref<1xi32, #tpu.memory_space<smem>>, %arg3: memref<16x128xf32, #tpu.memory_space<vmem>>, %arg4: memref<128x512xbf16, #tpu.memory_space<vmem>>, %arg5: memref<1x512xf32, #tpu.memory_space<vmem>>, %arg6: memref<512x128xbf16, #tpu.memory_space<vmem>>, %arg7: memref<1x128xf32, #tpu.memory_space<vmem>>, %arg8: memref<16x128xf32, #tpu.memory_space<vmem>>, %arg9: memref<16x128xf32, #tpu.memory_space<vmem>>) attributes {dimension_semantics = [#tpu.dimension_semantics<parallel>, #tpu.dimension_semantics<arbitrary>], iteration_bounds = array<i64: 1, 1>, scalar_prefetch = 1 : i64, scratch_operands = 1 : i64, tpu.core_type = #tpu.core_type<tc>, window_params = [{transform_indices = @transform_0, window_bounds = array<i64: 16, 128>}, {transform_indices = @transform_1, window_bounds = array<i64: 128, 512>}, {transform_indices = @transform_2, window_bounds = array<i64: 1, 512>}, {transform_indices = @transform_3, window_bounds = array<i64: 512, 128>}, {pipeline_mode = #tpu.pipeline_mode<synchronous>, transform_indices = @transform_4, window_bounds = array<i64: 1, 128>}, {transform_indices = @transform_5, window_bounds = array<i64: 16, 128>}]} {
    %c0_i32 = arith.constant 0 : i32
    %0 = arith.cmpi eq, %arg1, %c0_i32 : i32
    %1 = arith.extui %0 : i1 to i32
    %c0_i32_0 = arith.constant 0 : i32
    %2 = arith.cmpi ne, %1, %c0_i32_0 : i32
    scf.if %2 {
      %cst_16 = arith.constant 0.000000e+00 : f32
      %21 = vector.broadcast %cst_16 : f32 to vector<16x128xf32>
      %c0_17 = arith.constant 0 : index
      %c0_18 = arith.constant 0 : index
      %22 = vector.load %arg9[%c0_17, %c0_18] : memref<16x128xf32, #tpu.memory_space<vmem>>, vector<16x128xf32>
      tpu.vector_store %arg9[%c0_17, %c0_18], %21 {strides = array<i32>} : memref<16x128xf32, #tpu.memory_space<vmem>>, vector<16x128xf32>,
    } else {
    }
    %c0 = arith.constant 0 : index
    %c0_1 = arith.constant 0 : index
    %3 = vector.load %arg3[%c0, %c0_1] : memref<16x128xf32, #tpu.memory_space<vmem>>, vector<16x128xf32>
    %4 = arith.truncf %3 : vector<16x128xf32> to vector<16x128xbf16>
    %c0_2 = arith.constant 0 : index
    %c0_3 = arith.constant 0 : index
    %5 = vector.load %arg4[%c0_2, %c0_3] : memref<128x512xbf16, #tpu.memory_space<vmem>>, vector<128x512xbf16>
    %cst = arith.constant dense<0.000000e+00> : vector<16x512xf32>
    %6 = tpu.matmul %4, %5, %cst {dimension_numbers = #tpu.dot_dimension_numbers<[1], [0], [0], [1], [0, 0, 1, 1], [], []>} : vector<16x128xbf16>, vector<128x512xbf16>, vector<16x512xf32> -> vector<16x512xf32>
    %c0_4 = arith.constant 0 : index
    %c0_5 = arith.constant 0 : index
    %7 = vector.load %arg5[%c0_4, %c0_5] : memref<1x512xf32, #tpu.memory_space<vmem>>, vector<1x512xf32>
    %8 = vector.broadcast %7 : vector<1x512xf32> to vector<16x512xf32>
    %9 = arith.addf %6, %8 : vector<16x512xf32>
    %cst_6 = arith.constant 0.000000e+00 : f32
    %10 = vector.broadcast %cst_6 : f32 to vector<16x512xf32>
    %11 = arith.maximumf %9, %10 : vector<16x512xf32>
    %c0_7 = arith.constant 0 : index
    %c0_8 = arith.constant 0 : index
    %12 = vector.load %arg9[%c0_7, %c0_8] : memref<16x128xf32, #tpu.memory_space<vmem>>, vector<16x128xf32>
    %13 = arith.truncf %11 : vector<16x512xf32> to vector<16x512xbf16>
    %c0_9 = arith.constant 0 : index
    %c0_10 = arith.constant 0 : index
    %14 = vector.load %arg6[%c0_9, %c0_10] : memref<512x128xbf16, #tpu.memory_space<vmem>>, vector<512x128xbf16>
    %cst_11 = arith.constant dense<0.000000e+00> : vector<16x128xf32>
    %15 = tpu.matmul %13, %14, %cst_11 {dimension_numbers = #tpu.dot_dimension_numbers<[1], [0], [0], [1], [0, 0, 1, 1], [], []>} : vector<16x512xbf16>, vector<512x128xbf16>, vector<16x128xf32> -> vector<16x128xf32>
    %16 = arith.addf %12, %15 : vector<16x128xf32>
    %c0_12 = arith.constant 0 : index
    %c0_13 = arith.constant 0 : index
    %17 = vector.load %arg9[%c0_12, %c0_13] : memref<16x128xf32, #tpu.memory_space<vmem>>, vector<16x128xf32>
    tpu.vector_store %arg9[%c0_12, %c0_13], %16 {strides = array<i32>} : memref<16x128xf32, #tpu.memory_space<vmem>>, vector<16x128xf32>,
    %c0_i32_14 = arith.constant 0 : i32
    %18 = arith.cmpi eq, %arg1, %c0_i32_14 : i32
    %19 = arith.extui %18 : i1 to i32
    %c0_i32_15 = arith.constant 0 : i32
    %20 = arith.cmpi ne, %19, %c0_i32_15 : i32
    scf.if %20 {
      %c0_16 = arith.constant 0 : index
      %c0_17 = arith.constant 0 : index
      %21 = vector.load %arg9[%c0_16, %c0_17] : memref<16x128xf32, #tpu.memory_space<vmem>>, vector<16x128xf32>
      %c0_18 = arith.constant 0 : index
      %c0_19 = arith.constant 0 : index
      %22 = vector.load %arg7[%c0_18, %c0_19] : memref<1x128xf32, #tpu.memory_space<vmem>>, vector<1x128xf32>
      %23 = vector.broadcast %22 : vector<1x128xf32> to vector<16x128xf32>
      %24 = arith.addf %21, %23 : vector<16x128xf32>
      %c0_20 = arith.constant 0 : index
      %c0_21 = arith.constant 0 : index
      %25 = vector.load %arg8[%c0_20, %c0_21] : memref<16x128xf32, #tpu.memory_space<vmem>>, vector<16x128xf32>
      tpu.vector_store %arg8[%c0_20, %c0_21], %24 {strides = array<i32>} : memref<16x128xf32, #tpu.memory_space<vmem>>, vector<16x128xf32>,
    } else {
    }
    return
  }
  func.func @transform_0(%arg0: i32, %arg1: i32, %arg2: memref<1xi32, #tpu.memory_space<smem>>) -> (i32, i32) {
    %c0_i32 = arith.constant 0 : i32
    %c0_i32_0 = arith.constant 0 : i32
    return %arg0, %c0_i32 : i32, i32
  }
  func.func @transform_1(%arg0: i32, %arg1: i32, %arg2: memref<1xi32, #tpu.memory_space<smem>>) -> (i32, i32) {
    %c0_i32 = arith.constant 0 : i32
    %c0_i32_0 = arith.constant 0 : i32
    return %c0_i32, %arg1 : i32, i32
  }
  func.func @transform_2(%arg0: i32, %arg1: i32, %arg2: memref<1xi32, #tpu.memory_space<smem>>) -> (i32, i32) {
    %c0_i32 = arith.constant 0 : i32
    %c0_i32_0 = arith.constant 0 : i32
    return %c0_i32, %arg1 : i32, i32
  }
  func.func @transform_3(%arg0: i32, %arg1: i32, %arg2: memref<1xi32, #tpu.memory_space<smem>>) -> (i32, i32) {
    %c0_i32 = arith.constant 0 : i32
    %c0_i32_0 = arith.constant 0 : i32
    return %arg1, %c0_i32 : i32, i32
  }
  func.func @transform_4(%arg0: i32, %arg1: i32, %arg2: memref<1xi32, #tpu.memory_space<smem>>) -> (i32, i32) {
    %c0_i32 = arith.constant 0 : i32
    %c0_i32_0 = arith.constant 0 : i32
    %c0_i32_1 = arith.constant 0 : i32
    return %c0_i32, %c0_i32_0 : i32, i32
  }
  func.func @transform_5(%arg0: i32, %arg1: i32, %arg2: memref<1xi32, #tpu.memory_space<smem>>) -> (i32, i32) {
    %c0_i32 = arith.constant 0 : i32
    %c0_i32_0 = arith.constant 0 : i32
    return %arg0, %c0_i32 : i32, i32
  }
}

</mosaic_0001>

<llo_original>
// kernel: tpu_custom_call.1
$region0: #{tpu_custom_call.1}
  #allocation0 [shape = 'u32[]', space=smem, size = 0x4, offset = 0x4, fixed_abs, tag = 'smem constant byte address 0x4 - core index']
  #allocation1 [shape = 'u32[72,128]{1,0:T(1,128)}', space=vmem, size = 0x9000, scoped, tag = 'internal scratch']
  #allocation2 [shape = 'f32[16,128]{1,0:T(8,128)}', space=vmem, size = 0x2000, scoped, tag = 'scratch operand']
  #allocation3 [shape = 's32[1]{0}', space=sflag, size = 0x4, scoped, tag = 'scoped memory for tpu_custom_call.1']
  #allocation4 [shape = 's32[1]{0:T(128)S(6)}', space=smem, size = 0x200, scoped, tag = 'prefetched SMEM operand 0']
  %s0 = inlined_call_operand.<no memory space> [shape: s32[1], index: 0, kind: input, shape index: {}]
  %s1 = inlined_call_operand.hbm [shape: f32[16,128], index: 1, kind: input, shape index: {}]
  %s2 = inlined_call_operand.hbm [shape: bf16[128,512], index: 2, kind: input, shape index: {}]
  %s3 = inlined_call_operand.hbm [shape: f32[1,512], index: 3, kind: input, shape index: {}]
  %s4 = inlined_call_operand.hbm [shape: bf16[512,128], index: 4, kind: input, shape index: {}]
  %s5 = inlined_call_operand.vmem [shape: f32[1,128], index: 5, kind: input, shape index: {}]
  %s6 = inlined_call_operand.hbm [shape: f32[16,128], index: 6, kind: output, shape index: {}]
  %s7 = sld [smem:[#allocation0]]
  $region54: #{tpu_custom_call.1} parent=0
    _
  %s9 = ssub.s32 1, %s7
  %s10 = scalar_select 0, %s9, %s7
  %11 = sst [smem:[#allocation4]] %s0
  $region1: #{tpu_custom_call.1} parent=0
    #allocation5 [shape = 'u8[8192]{0}', space=vmem, size = 0x2000, scoped, tag = 'input window, operand 1, single buffered']
    #allocation6 [shape = 's32[1]{0}', space=sflag, size = 0x4, scoped, tag = 'scoped memory for tpu_custom_call.1']
    #allocation7 [shape = 's32[1]{0}', space=sflag, size = 0x4, scoped, tag = 'scoped memory for tpu_custom_call.1']
    #allocation8 [shape = 'u8[131072]{0}', space=vmem, size = 0x20000, scoped, tag = 'input window, operand 2, single buffered']
    #allocation9 [shape = 's32[1]{0}', space=sflag, size = 0x4, scoped, tag = 'scoped memory for tpu_custom_call.1']
    #allocation10 [shape = 'u8[2048]{0}', space=vmem, size = 0x800, scoped, tag = 'input window, operand 3, single buffered']
    #allocation11 [shape = 'u8[131072]{0}', space=vmem, size = 0x20000, scoped, tag = 'input window, operand 4, single buffered']
    #allocation12 [shape = 's32[1]{0}', space=sflag, size = 0x4, scoped, tag = 'scoped memory for tpu_custom_call.1']
    #allocation13 [shape = 'u8[8192]{0}', space=vmem, size = 0x2000, scoped, tag = 'output window, operand 0, single buffered']
    %12 = vsyncpa [#allocation6], 0
    %13 = vsyncpa [#allocation9], 0
    %14 = vsyncpa [#allocation12], 0
    %15 = vsyncpa [#allocation7], 0
    // Predicated region
    $region2: #{tpu_custom_call.1} parent=1 // pred_check
      _
    $region3: #{tpu_custom_call.1} parent=1 // pred_check_branch
      %17 = sbr.rel (0) target = $region5
    $region4: #{tpu_custom_call.1} parent=1 // pred_region
      %19 = vsyncadd [#allocation6], 0
      %s20 = sshll.u32 %s1, 4
      %s21 = int_to_ptr.hbm [resolvable:$true] %s20
      %s22 = sshll.u32 [#allocation5], 4
      %s23 = int_to_ptr.vmem [resolvable:$true] %s22
      %28 = dma.hbm_to_vmem [thread:$0]  %s21, 256, %s23, [#allocation6], 128, 128, 8
    $region5: #{tpu_custom_call.1} parent=1 // pred_fallthru
      _
    // Predicated region
    $region6: #{tpu_custom_call.1} parent=1 // pred_check
      _
    $region7: #{tpu_custom_call.1} parent=1 // pred_check_branch
      %30 = sbr.rel (0) target = $region9
    $region8: #{tpu_custom_call.1} parent=1 // pred_region
      %32 = vsyncadd [#allocation9], 0
      %s33 = sshll.u32 %s2, 4
      %s34 = int_to_ptr.hbm [resolvable:$true] %s33
      %s35 = sshll.u32 [#allocation8], 4
      %s36 = int_to_ptr.vmem [resolvable:$true] %s35
      %41 = dma.hbm_to_vmem [thread:$0]  %s34, 4096, %s36, [#allocation9], 256, 256, 16
    $region9: #{tpu_custom_call.1} parent=1 // pred_fallthru
      _
    // Predicated region
    $region10: #{tpu_custom_call.1} parent=1 // pred_check
      _
    $region11: #{tpu_custom_call.1} parent=1 // pred_check_branch
      %43 = sbr.rel (0) target = $region13
    $region12: #{tpu_custom_call.1} parent=1 // pred_region
      %45 = vsyncadd [#allocation9], 0
      %s47 = sshll.u32 %s3, 4
      %s48 = int_to_ptr.hbm [resolvable:$true] %s47
      %s49 = sshll.u32 [#allocation10], 4
      %s50 = int_to_ptr.vmem [resolvable:$true] %s49
      %52 = dma.hbm_to_vmem [thread:$0]  %s48, 64, %s50, [#allocation9]
    $region13: #{tpu_custom_call.1} parent=1 // pred_fallthru
      _
    // Predicated region
    $region14: #{tpu_custom_call.1} parent=1 // pred_check
      _
    $region15: #{tpu_custom_call.1} parent=1 // pred_check_branch
      %54 = sbr.rel (0) target = $region17
    $region16: #{tpu_custom_call.1} parent=1 // pred_region
      %56 = vsyncadd [#allocation12], 0
      %s57 = sshll.u32 %s4, 4
      %s58 = int_to_ptr.hbm [resolvable:$true] %s57
      %s59 = sshll.u32 [#allocation11], 4
      %s60 = int_to_ptr.vmem [resolvable:$true] %s59
      %65 = dma.hbm_to_vmem [thread:$0]  %s58, 4096, %s60, [#allocation12], 64, 64, 4
    $region17: #{tpu_custom_call.1} parent=1 // pred_fallthru
      _
    // Predicated region
    $region18: #{tpu_custom_call.1} parent=1 // pred_check
      _
    $region19: #{tpu_custom_call.1} parent=1 // pred_check_branch
      %67 = sbr.rel (0) target = $region21
    $region20: #{tpu_custom_call.1} parent=1 // pred_region
      _
    $region21: #{tpu_custom_call.1} parent=1 // pred_fallthru
      _
    // Predicated region
    $region22: #{tpu_custom_call.1} parent=1 // pred_check
      _
    $region23: #{tpu_custom_call.1} parent=1 // pred_check_branch
      %69 = sbr.rel (0) target = $region25
    $region24: #{tpu_custom_call.1} parent=1 // pred_region
      %71 = dma.done [#allocation6], 256
    $region25: #{tpu_custom_call.1} parent=1 // pred_fallthru
      _
    // Predicated region
    $region26: #{tpu_custom_call.1} parent=1 // pred_check
      _
    $region27: #{tpu_custom_call.1} parent=1 // pred_check_branch
      %73 = sbr.rel (0) target = $region29
    $region28: #{tpu_custom_call.1} parent=1 // pred_region
      %75 = dma.done [#allocation9], 4096
    $region29: #{tpu_custom_call.1} parent=1 // pred_fallthru
      _
    // Predicated region
    $region30: #{tpu_custom_call.1} parent=1 // pred_check
      _
    $region31: #{tpu_custom_call.1} parent=1 // pred_check_branch
      %77 = sbr.rel (0) target = $region33
    $region32: #{tpu_custom_call.1} parent=1 // pred_region
      %79 = dma.done [#allocation9], 64
    $region33: #{tpu_custom_call.1} parent=1 // pred_fallthru
      _
    // Predicated region
    $region34: #{tpu_custom_call.1} parent=1 // pred_check
      _
    $region35: #{tpu_custom_call.1} parent=1 // pred_check_branch
      %81 = sbr.rel (0) target = $region37
    $region36: #{tpu_custom_call.1} parent=1 // pred_region
      %83 = dma.done [#allocation12], 4096
    $region37: #{tpu_custom_call.1} parent=1 // pred_fallthru
      _
    %p84 = scmp.eq.s32.totalorder 0, 0
    // Predicated region
    $region38: #{tpu_custom_call.1} parent=1 // pred_check
      %p85 = pneg %p84
    $region39: #{tpu_custom_call.1} parent=1 // pred_check_branch
      %87 = sbr.rel (%p85) target = $region41
    $region40: #{tpu_custom_call.1} parent=1 // pred_region
      %88 = vst [vmem:[#allocation2] sm:$0xff] 0.0
      %89 = vst [vmem:[#allocation2 + $0x8] sm:$0xff] 0.0
    $region41: #{tpu_custom_call.1} parent=1 // pred_fallthru
      _
    %v90 = vld [vmem:[#allocation5] sm:$0xff]
    %v91 = vld [vmem:[#allocation5 + $0x8] sm:$0xff]
    %v92 = vpack.c.bf16 %v91, %v90
    %v93 = vld [vmem:[#allocation8] sm:$0xff]
    %v94 = vld [vmem:[#allocation8 + $0x8] sm:$0xff]
    %v95 = vld [vmem:[#allocation8 + $0x10] sm:$0xff]
    %v96 = vld [vmem:[#allocation8 + $0x18] sm:$0xff]
    %v97 = vld [vmem:[#allocation8 + $0x20] sm:$0xff]
    %v98 = vld [vmem:[#allocation8 + $0x28] sm:$0xff]
    %v99 = vld [vmem:[#allocation8 + $0x30] sm:$0xff]
    %v100 = vld [vmem:[#allocation8 + $0x38] sm:$0xff]
    %v101 = vld [vmem:[#allocation8 + $0x40] sm:$0xff]
    %v102 = vld [vmem:[#allocation8 + $0x48] sm:$0xff]
    %v103 = vld [vmem:[#allocation8 + $0x50] sm:$0xff]
    %v104 = vld [vmem:[#allocation8 + $0x58] sm:$0xff]
    %v105 = vld [vmem:[#allocation8 + $0x60] sm:$0xff]
    %v106 = vld [vmem:[#allocation8 + $0x68] sm:$0xff]
    %v107 = vld [vmem:[#allocation8 + $0x70] sm:$0xff]
    %v108 = vld [vmem:[#allocation8 + $0x78] sm:$0xff]
    %v109 = vld [vmem:[#allocation8 + $0x80] sm:$0xff]
    %v110 = vld [vmem:[#allocation8 + $0x88] sm:$0xff]
    %v111 = vld [vmem:[#allocation8 + $0x90] sm:$0xff]
    %v112 = vld [vmem:[#allocation8 + $0x98] sm:$0xff]
    %v113 = vld [vmem:[#allocation8 + $0xa0] sm:$0xff]
    %v114 = vld [vmem:[#allocation8 + $0xa8] sm:$0xff]
    %v115 = vld [vmem:[#allocation8 + $0xb0] sm:$0xff]
    %v116 = vld [vmem:[#allocation8 + $0xb8] sm:$0xff]
    %v117 = vld [vmem:[#allocation8 + $0xc0] sm:$0xff]
    %v118 = vld [vmem:[#allocation8 + $0xc8] sm:$0xff]
    %v119 = vld [vmem:[#allocation8 + $0xd0] sm:$0xff]
    %v120 = vld [vmem:[#allocation8 + $0xd8] sm:$0xff]
    %v121 = vld [vmem:[#allocation8 + $0xe0] sm:$0xff]
    %v122 = vld [vmem:[#allocation8 + $0xe8] sm:$0xff]
    %v123 = vld [vmem:[#allocation8 + $0xf0] sm:$0xff]
    %v124 = vld [vmem:[#allocation8 + $0xf8] sm:$0xff]
    %v125 = vld [vmem:[#allocation10] sm:$0xf]
    %v127 = vperm.slane %v125, 0
    %v128 = vperm.slane %v125, 1
    %v129 = vperm.slane %v125, 2
    %v130 = vperm.slane %v125, 3
    %v167 = vunpack.c.l.b16 %v93
    %v168 = vunpack.c.h.b16 %v93
    %v169 = vunpack.c.l.b16 %v94
    %v170 = vunpack.c.h.b16 %v94
    %v171 = vunpack.c.l.b16 %v95
    %v172 = vunpack.c.h.b16 %v95
    %v173 = vunpack.c.l.b16 %v96
    %v174 = vunpack.c.h.b16 %v96
    %v175 = vunpack.c.l.b16 %v97
    %v176 = vunpack.c.h.b16 %v97
    %v177 = vunpack.c.l.b16 %v98
    %v178 = vunpack.c.h.b16 %v98
    %v179 = vunpack.c.l.b16 %v99
    %v180 = vunpack.c.h.b16 %v99
    %v181 = vunpack.c.l.b16 %v100
    %v182 = vunpack.c.h.b16 %v100
    %v183 = vunpack.c.l.b16 %v101
    %v184 = vunpack.c.h.b16 %v101
    %v185 = vunpack.c.l.b16 %v102
    %v186 = vunpack.c.h.b16 %v102
    %v187 = vunpack.c.l.b16 %v103
    %v188 = vunpack.c.h.b16 %v103
    %v189 = vunpack.c.l.b16 %v104
    %v190 = vunpack.c.h.b16 %v104
    %v191 = vunpack.c.l.b16 %v105
    %v192 = vunpack.c.h.b16 %v105
    %v193 = vunpack.c.l.b16 %v106
    %v194 = vunpack.c.h.b16 %v106
    %v195 = vunpack.c.l.b16 %v107
    %v196 = vunpack.c.h.b16 %v107
    %v197 = vunpack.c.l.b16 %v108
    %v198 = vunpack.c.h.b16 %v108
    %v199 = vunpack.c.l.b16 %v109
    %v200 = vunpack.c.h.b16 %v109
    %v201 = vunpack.c.l.b16 %v110
    %v202 = vunpack.c.h.b16 %v110
    %v203 = vunpack.c.l.b16 %v111
    %v204 = vunpack.c.h.b16 %v111
    %v205 = vunpack.c.l.b16 %v112
    %v206 = vunpack.c.h.b16 %v112
    %v207 = vunpack.c.l.b16 %v113
    %v208 = vunpack.c.h.b16 %v113
    %v209 = vunpack.c.l.b16 %v114
    %v210 = vunpack.c.h.b16 %v114
    %v211 = vunpack.c.l.b16 %v115
    %v212 = vunpack.c.h.b16 %v115
    %v213 = vunpack.c.l.b16 %v116
    %v214 = vunpack.c.h.b16 %v116
    %v215 = vunpack.c.l.b16 %v117
    %v216 = vunpack.c.h.b16 %v117
    %v217 = vunpack.c.l.b16 %v118
    %v218 = vunpack.c.h.b16 %v118
    %v219 = vunpack.c.l.b16 %v119
    %v220 = vunpack.c.h.b16 %v119
    %v221 = vunpack.c.l.b16 %v120
    %v222 = vunpack.c.h.b16 %v120
    %v223 = vunpack.c.l.b16 %v121
    %v224 = vunpack.c.h.b16 %v121
    %v225 = vunpack.c.l.b16 %v122
    %v226 = vunpack.c.h.b16 %v122
    %v227 = vunpack.c.l.b16 %v123
    %v228 = vunpack.c.h.b16 %v123
    %v229 = vunpack.c.l.b16 %v124
    %v230 = vunpack.c.h.b16 %v124
    %v231 = vpack.c.b16 %v171, %v167
    %v232 = vpack.c.b16 %v172, %v168
    %v233 = vpack.c.b16 %v173, %v169
    %v234 = vpack.c.b16 %v174, %v170
    %v235 = vpack.c.b16 %v179, %v175
    %v236 = vpack.c.b16 %v180, %v176
    %v237 = vpack.c.b16 %v181, %v177
    %v238 = vpack.c.b16 %v182, %v178
    %v239 = vpack.c.b16 %v187, %v183
    %v240 = vpack.c.b16 %v188, %v184
    %v241 = vpack.c.b16 %v189, %v185
    %v242 = vpack.c.b16 %v190, %v186
    %v243 = vpack.c.b16 %v195, %v191
    %v244 = vpack.c.b16 %v196, %v192
    %v245 = vpack.c.b16 %v197, %v193
    %v246 = vpack.c.b16 %v198, %v194
    %v247 = vpack.c.b16 %v203, %v199
    %v248 = vpack.c.b16 %v204, %v200
    %v249 = vpack.c.b16 %v205, %v201
    %v250 = vpack.c.b16 %v206, %v202
    %v251 = vpack.c.b16 %v211, %v207
    %v252 = vpack.c.b16 %v212, %v208
    %v253 = vpack.c.b16 %v213, %v209
    %v254 = vpack.c.b16 %v214, %v210
    %v255 = vpack.c.b16 %v219, %v215
    %v256 = vpack.c.b16 %v220, %v216
    %v257 = vpack.c.b16 %v221, %v217
    %v258 = vpack.c.b16 %v222, %v218
    %v259 = vpack.c.b16 %v227, %v223
    %v260 = vpack.c.b16 %v228, %v224
    %v261 = vpack.c.b16 %v229, %v225
    %v262 = vpack.c.b16 %v230, %v226
    %295 = vmatpush.bf16.msra.mxu0 %v259
    %296 = vmatpush.bf16.msra.mxu0 %v255
    %297 = vmatpush.bf16.msra.mxu0 %v251
    %298 = vmatpush.bf16.msra.mxu0 %v247
    %299 = vmatpush.bf16.msra.mxu0 %v243
    %300 = vmatpush.bf16.msra.mxu0 %v239
    %301 = vmatpush.bf16.msra.mxu0 %v235
    %302 = vmatpush.bf16.msra.mxu0 %v231
    %303 = vmatmul.bf16.gmra.mxu0 %v92
    %v304 = vpop.f32.mrf.mxu0
    %v305 = vadd.f32 %v127, %v304
    %v306 = vpop.f32.mrf.mxu0
    %v307 = vadd.f32 %v127, %v306
    %308 = vdwg.mxu0
    %309 = vmatpush.bf16.msra.mxu0 %v260
    %310 = vmatpush.bf16.msra.mxu0 %v256
    %311 = vmatpush.bf16.msra.mxu0 %v252
    %312 = vmatpush.bf16.msra.mxu0 %v248
    %313 = vmatpush.bf16.msra.mxu0 %v244
    %314 = vmatpush.bf16.msra.mxu0 %v240
    %315 = vmatpush.bf16.msra.mxu0 %v236
    %316 = vmatpush.bf16.msra.mxu0 %v232
    %317 = vmatmul.bf16.gmra.mxu0 %v92
    %v318 = vpop.f32.mrf.mxu0
    %v319 = vadd.f32 %v128, %v318
    %v320 = vpop.f32.mrf.mxu0
    %v321 = vadd.f32 %v128, %v320
    %322 = vdwg.mxu0
    %323 = vmatpush.bf16.msra.mxu0 %v261
    %324 = vmatpush.bf16.msra.mxu0 %v257
    %325 = vmatpush.bf16.msra.mxu0 %v253
    %326 = vmatpush.bf16.msra.mxu0 %v249
    %327 = vmatpush.bf16.msra.mxu0 %v245
    %328 = vmatpush.bf16.msra.mxu0 %v241
    %329 = vmatpush.bf16.msra.mxu0 %v237
    %330 = vmatpush.bf16.msra.mxu0 %v233
    %331 = vmatmul.bf16.gmra.mxu0 %v92
    %v332 = vpop.f32.mrf.mxu0
    %v333 = vadd.f32 %v129, %v332
    %v334 = vpop.f32.mrf.mxu0
    %v335 = vadd.f32 %v129, %v334
    %336 = vdwg.mxu0
    %337 = vmatpush.bf16.msra.mxu0 %v262
    %338 = vmatpush.bf16.msra.mxu0 %v258
    %339 = vmatpush.bf16.msra.mxu0 %v254
    %340 = vmatpush.bf16.msra.mxu0 %v250
    %341 = vmatpush.bf16.msra.mxu0 %v246
    %342 = vmatpush.bf16.msra.mxu0 %v242
    %343 = vmatpush.bf16.msra.mxu0 %v238
    %344 = vmatpush.bf16.msra.mxu0 %v234
    %345 = vmatmul.bf16.gmra.mxu0 %v92
    %v346 = vpop.f32.mrf.mxu0
    %v347 = vadd.f32 %v130, %v346
    %v348 = vpop.f32.mrf.mxu0
    %v349 = vadd.f32 %v130, %v348
    %350 = vdwg.mxu0
    %v351 = vmax.f32 %v305, 0.0
    %v352 = vmax.f32 %v319, 0.0
    %v353 = vmax.f32 %v333, 0.0
    %v354 = vmax.f32 %v347, 0.0
    %v355 = vmax.f32 %v307, 0.0
    %v356 = vmax.f32 %v321, 0.0
    %v357 = vmax.f32 %v335, 0.0
    %v358 = vmax.f32 %v349, 0.0
    %v359 = vld [vmem:[#allocation2] sm:$0xff]
    %v360 = vld [vmem:[#allocation2 + $0x8] sm:$0xff]
    %v361 = vpack.c.bf16 %v355, %v351
    %v362 = vpack.c.bf16 %v356, %v352
    %v363 = vpack.c.bf16 %v357, %v353
    %v364 = vpack.c.bf16 %v358, %v354
    %v365 = vld [vmem:[#allocation11] sm:$0xf]
    %v366 = vld [vmem:[#allocation11 + $0x4] sm:$0xf]
    %v367 = vld [vmem:[#allocation11 + $0x8] sm:$0xf]
    %v368 = vld [vmem:[#allocation11 + $0xc] sm:$0xf]
    %v369 = vld [vmem:[#allocation11 + $0x10] sm:$0xf]
    %v370 = vld [vmem:[#allocation11 + $0x14] sm:$0xf]
    %v371 = vld [vmem:[#allocation11 + $0x18] sm:$0xf]
    %v372 = vld [vmem:[#allocation11 + $0x1c] sm:$0xf]
    %v373 = vld [vmem:[#allocation11 + $0x20] sm:$0xf]
    %v374 = vld [vmem:[#allocation11 + $0x24] sm:$0xf]
    %v375 = vld [vmem:[#allocation11 + $0x28] sm:$0xf]
    %v376 = vld [vmem:[#allocation11 + $0x2c] sm:$0xf]
    %v377 = vld [vmem:[#allocation11 + $0x30] sm:$0xf]
    %v378 = vld [vmem:[#allocation11 + $0x34] sm:$0xf]
    %v379 = vld [vmem:[#allocation11 + $0x38] sm:$0xf]
    %v380 = vld [vmem:[#allocation11 + $0x3c] sm:$0xf]
    %v381 = vld [vmem:[#allocation11 + $0x40] sm:$0xf]
    %v382 = vld [vmem:[#allocation11 + $0x44] sm:$0xf]
    %v383 = vld [vmem:[#allocation11 + $0x48] sm:$0xf]
    %v384 = vld [vmem:[#allocation11 + $0x4c] sm:$0xf]
    %v385 = vld [vmem:[#allocation11 + $0x50] sm:$0xf]
    %v386 = vld [vmem:[#allocation11 + $0x54] sm:$0xf]
    %v387 = vld [vmem:[#allocation11 + $0x58] sm:$0xf]
    %v388 = vld [vmem:[#allocation11 + $0x5c] sm:$0xf]
    %v389 = vld [vmem:[#allocation11 + $0x60] sm:$0xf]
    %v390 = vld [vmem:[#allocation11 + $0x64] sm:$0xf]
    %v391 = vld [vmem:[#allocation11 + $0x68] sm:$0xf]
    %v392 = vld [vmem:[#allocation11 + $0x6c] sm:$0xf]
    %v393 = vld [vmem:[#allocation11 + $0x70] sm:$0xf]
    %v394 = vld [vmem:[#allocation11 + $0x74] sm:$0xf]
    %v395 = vld [vmem:[#allocation11 + $0x78] sm:$0xf]
    %v396 = vld [vmem:[#allocation11 + $0x7c] sm:$0xf]
    %v397 = vld [vmem:[#allocation11 + $0x80] sm:$0xf]
    %v398 = vld [vmem:[#allocation11 + $0x84] sm:$0xf]
    %v399 = vld [vmem:[#allocation11 + $0x88] sm:$0xf]
    %v400 = vld [vmem:[#allocation11 + $0x8c] sm:$0xf]
    %v401 = vld [vmem:[#allocation11 + $0x90] sm:$0xf]
    %v402 = vld [vmem:[#allocation11 + $0x94] sm:$0xf]
    %v403 = vld [vmem:[#allocation11 + $0x98] sm:$0xf]
    %v404 = vld [vmem:[#allocation11 + $0x9c] sm:$0xf]
    %v405 = vld [vmem:[#allocation11 + $0xa0] sm:$0xf]
    %v406 = vld [vmem:[#allocation11 + $0xa4] sm:$0xf]
    %v407 = vld [vmem:[#allocation11 + $0xa8] sm:$0xf]
    %v408 = vld [vmem:[#allocation11 + $0xac] sm:$0xf]
    %v409 = vld [vmem:[#allocation11 + $0xb0] sm:$0xf]
    %v410 = vld [vmem:[#allocation11 + $0xb4] sm:$0xf]
    %v411 = vld [vmem:[#allocation11 + $0xb8] sm:$0xf]
    %v412 = vld [vmem:[#allocation11 + $0xbc] sm:$0xf]
    %v413 = vld [vmem:[#allocation11 + $0xc0] sm:$0xf]
    %v414 = vld [vmem:[#allocation11 + $0xc4] sm:$0xf]
    %v415 = vld [vmem:[#allocation11 + $0xc8] sm:$0xf]
    %v416 = vld [vmem:[#allocation11 + $0xcc] sm:$0xf]
    %v417 = vld [vmem:[#allocation11 + $0xd0] sm:$0xf]
    %v418 = vld [vmem:[#allocation11 + $0xd4] sm:$0xf]
    %v419 = vld [vmem:[#allocation11 + $0xd8] sm:$0xf]
    %v420 = vld [vmem:[#allocation11 + $0xdc] sm:$0xf]
    %v421 = vld [vmem:[#allocation11 + $0xe0] sm:$0xf]
    %v422 = vld [vmem:[#allocation11 + $0xe4] sm:$0xf]
    %v423 = vld [vmem:[#allocation11 + $0xe8] sm:$0xf]
    %v424 = vld [vmem:[#allocation11 + $0xec] sm:$0xf]
    %v425 = vld [vmem:[#allocation11 + $0xf0] sm:$0xf]
    %v426 = vld [vmem:[#allocation11 + $0xf4] sm:$0xf]
    %v427 = vld [vmem:[#allocation11 + $0xf8] sm:$0xf]
    %v428 = vld [vmem:[#allocation11 + $0xfc] sm:$0xf]
    %v493 = vunpack.c.l.b16 %v365
    %v494 = vunpack.c.l.b16 %v366
    %v495 = vunpack.c.l.b16 %v367
    %v496 = vunpack.c.l.b16 %v368
    %v497 = vunpack.c.l.b16 %v369
    %v498 = vunpack.c.l.b16 %v370
    %v499 = vunpack.c.l.b16 %v371
    %v500 = vunpack.c.l.b16 %v372
    %v501 = vunpack.c.l.b16 %v373
    %v502 = vunpack.c.l.b16 %v374
    %v503 = vunpack.c.l.b16 %v375
    %v504 = vunpack.c.l.b16 %v376
    %v505 = vunpack.c.l.b16 %v377
    %v506 = vunpack.c.l.b16 %v378
    %v507 = vunpack.c.l.b16 %v379
    %v508 = vunpack.c.l.b16 %v380
    %v509 = vunpack.c.l.b16 %v381
    %v510 = vunpack.c.l.b16 %v382
    %v511 = vunpack.c.l.b16 %v383
    %v512 = vunpack.c.l.b16 %v384
    %v513 = vunpack.c.l.b16 %v385
    %v514 = vunpack.c.l.b16 %v386
    %v515 = vunpack.c.l.b16 %v387
    %v516 = vunpack.c.l.b16 %v388
    %v517 = vunpack.c.l.b16 %v389
    %v518 = vunpack.c.l.b16 %v390
    %v519 = vunpack.c.l.b16 %v391
    %v520 = vunpack.c.l.b16 %v392
    %v521 = vunpack.c.l.b16 %v393
    %v522 = vunpack.c.l.b16 %v394
    %v523 = vunpack.c.l.b16 %v395
    %v524 = vunpack.c.l.b16 %v396
    %v525 = vunpack.c.l.b16 %v397
    %v526 = vunpack.c.l.b16 %v398
    %v527 = vunpack.c.l.b16 %v399
    %v528 = vunpack.c.l.b16 %v400
    %v529 = vunpack.c.l.b16 %v401
    %v530 = vunpack.c.l.b16 %v402
    %v531 = vunpack.c.l.b16 %v403
    %v532 = vunpack.c.l.b16 %v404
    %v533 = vunpack.c.l.b16 %v405
    %v534 = vunpack.c.l.b16 %v406
    %v535 = vunpack.c.l.b16 %v407
    %v536 = vunpack.c.l.b16 %v408
    %v537 = vunpack.c.l.b16 %v409
    %v538 = vunpack.c.l.b16 %v410
    %v539 = vunpack.c.l.b16 %v411
    %v540 = vunpack.c.l.b16 %v412
    %v541 = vunpack.c.l.b16 %v413
    %v542 = vunpack.c.l.b16 %v414
    %v543 = vunpack.c.l.b16 %v415
    %v544 = vunpack.c.l.b16 %v416
    %v545 = vunpack.c.l.b16 %v417
    %v546 = vunpack.c.l.b16 %v418
    %v547 = vunpack.c.l.b16 %v419
    %v548 = vunpack.c.l.b16 %v420
    %v549 = vunpack.c.l.b16 %v421
    %v550 = vunpack.c.l.b16 %v422
    %v551 = vunpack.c.l.b16 %v423
    %v552 = vunpack.c.l.b16 %v424
    %v553 = vunpack.c.l.b16 %v425
    %v554 = vunpack.c.l.b16 %v426
    %v555 = vunpack.c.l.b16 %v427
    %v556 = vunpack.c.l.b16 %v428
    %v557 = vpack.c.b16 %v494, %v493
    %v558 = vpack.c.b16 %v496, %v495
    %v559 = vpack.c.b16 %v498, %v497
    %v560 = vpack.c.b16 %v500, %v499
    %v561 = vpack.c.b16 %v502, %v501
    %v562 = vpack.c.b16 %v504, %v503
    %v563 = vpack.c.b16 %v506, %v505
    %v564 = vpack.c.b16 %v508, %v507
    %v565 = vpack.c.b16 %v510, %v509
    %v566 = vpack.c.b16 %v512, %v511
    %v567 = vpack.c.b16 %v514, %v513
    %v568 = vpack.c.b16 %v516, %v515
    %v569 = vpack.c.b16 %v518, %v517
    %v570 = vpack.c.b16 %v520, %v519
    %v571 = vpack.c.b16 %v522, %v521
    %v572 = vpack.c.b16 %v524, %v523
    %v573 = vpack.c.b16 %v526, %v525
    %v574 = vpack.c.b16 %v528, %v527
    %v575 = vpack.c.b16 %v530, %v529
    %v576 = vpack.c.b16 %v532, %v531
    %v577 = vpack.c.b16 %v534, %v533
    %v578 = vpack.c.b16 %v536, %v535
    %v579 = vpack.c.b16 %v538, %v537
    %v580 = vpack.c.b16 %v540, %v539
    %v581 = vpack.c.b16 %v542, %v541
    %v582 = vpack.c.b16 %v544, %v543
    %v583 = vpack.c.b16 %v546, %v545
    %v584 = vpack.c.b16 %v548, %v547
    %v585 = vpack.c.b16 %v550, %v549
    %v586 = vpack.c.b16 %v552, %v551
    %v587 = vpack.c.b16 %v554, %v553
    %v588 = vpack.c.b16 %v556, %v555
    %621 = vmatpush.bf16.msra.mxu0 %v564
    %622 = vmatpush.bf16.msra.mxu0 %v563
    %623 = vmatpush.bf16.msra.mxu0 %v562
    %624 = vmatpush.bf16.msra.mxu0 %v561
    %625 = vmatpush.bf16.msra.mxu0 %v560
    %626 = vmatpush.bf16.msra.mxu0 %v559
    %627 = vmatpush.bf16.msra.mxu0 %v558
    %628 = vmatpush.bf16.msra.mxu0 %v557
    %629 = vmatmul.bf16.gmra.mxu0 %v361
    %v630 = vpop.f32.mrf.mxu0
    %v631 = vadd.f32 0.0, %v630
    %v632 = vpop.f32.mrf.mxu0
    %v633 = vadd.f32 0.0, %v632
    %634 = vdwg.mxu0
    %635 = vmatpush.bf16.msra.mxu0 %v572
    %636 = vmatpush.bf16.msra.mxu0 %v571
    %637 = vmatpush.bf16.msra.mxu0 %v570
    %638 = vmatpush.bf16.msra.mxu0 %v569
    %639 = vmatpush.bf16.msra.mxu0 %v568
    %640 = vmatpush.bf16.msra.mxu0 %v567
    %641 = vmatpush.bf16.msra.mxu0 %v566
    %642 = vmatpush.bf16.msra.mxu0 %v565
    %643 = vmatmul.bf16.gmra.mxu0 %v362
    %v644 = vpop.f32.mrf.mxu0
    %v645 = vadd.f32 %v631, %v644
    %v646 = vpop.f32.mrf.mxu0
    %v647 = vadd.f32 %v633, %v646
    %648 = vdwg.mxu0
    %649 = vmatpush.bf16.msra.mxu0 %v580
    %650 = vmatpush.bf16.msra.mxu0 %v579
    %651 = vmatpush.bf16.msra.mxu0 %v578
    %652 = vmatpush.bf16.msra.mxu0 %v577
    %653 = vmatpush.bf16.msra.mxu0 %v576
    %654 = vmatpush.bf16.msra.mxu0 %v575
    %655 = vmatpush.bf16.msra.mxu0 %v574
    %656 = vmatpush.bf16.msra.mxu0 %v573
    %657 = vmatmul.bf16.gmra.mxu0 %v363
    %v658 = vpop.f32.mrf.mxu0
    %v659 = vadd.f32 %v645, %v658
    %v660 = vpop.f32.mrf.mxu0
    %v661 = vadd.f32 %v647, %v660
    %662 = vdwg.mxu0
    %663 = vmatpush.bf16.msra.mxu0 %v588
    %664 = vmatpush.bf16.msra.mxu0 %v587
    %665 = vmatpush.bf16.msra.mxu0 %v586
    %666 = vmatpush.bf16.msra.mxu0 %v585
    %667 = vmatpush.bf16.msra.mxu0 %v584
    %668 = vmatpush.bf16.msra.mxu0 %v583
    %669 = vmatpush.bf16.msra.mxu0 %v582
    %670 = vmatpush.bf16.msra.mxu0 %v581
    %671 = vmatmul.bf16.gmra.mxu0 %v364
    %v672 = vpop.f32.mrf.mxu0
    %v673 = vadd.f32 %v659, %v672
    %v674 = vpop.f32.mrf.mxu0
    %v675 = vadd.f32 %v661, %v674
    %676 = vdwg.mxu0
    %v677 = vadd.f32 %v359, %v673
    %v678 = vadd.f32 %v360, %v675
    %679 = vst [vmem:[#allocation2] sm:$0xff] %v677
    %680 = vst [vmem:[#allocation2 + $0x8] sm:$0xff] %v678
    // Predicated region
    $region42: #{tpu_custom_call.1} parent=1 // pred_check
      %p681 = pneg %p84
    $region43: #{tpu_custom_call.1} parent=1 // pred_check_branch
      %683 = sbr.rel (%p681) target = $region45
    $region44: #{tpu_custom_call.1} parent=1 // pred_region
      %v684 = vld [vmem:[#allocation2] sm:$0xff]
      %v685 = vld [vmem:[#allocation2 + $0x8] sm:$0xff]
      %v686 = vld [vmem:[%s5] sm:$0x1]
      %v688 = vperm.slane %v686, 0
      %v690 = vadd.f32 %v684, %v688
      %v691 = vadd.f32 %v685, %v688
      %692 = vst [vmem:[#allocation13] sm:$0xff] %v690
      %693 = vst [vmem:[#allocation13 + $0x8] sm:$0xff] %v691
    $region45: #{tpu_custom_call.1} parent=1 // pred_fallthru
      _
    // Predicated region
    $region46: #{tpu_custom_call.1} parent=1 // pred_check
      _
    $region47: #{tpu_custom_call.1} parent=1 // pred_check_branch
      %695 = sbr.rel (0) target = $region49
    $region48: #{tpu_custom_call.1} parent=1 // pred_region
      %697 = vsyncadd [#allocation7], 0
      %s698 = sshll.u32 [#allocation13], 4
      %s699 = int_to_ptr.vmem [resolvable:$true] %s698
      %s700 = sshll.u32 %s6, 4
      %s701 = int_to_ptr.hbm [resolvable:$true] %s700
      %706 = dma.vmem_to_hbm [thread:$0]  %s699, 256, %s701, [#allocation7], 128, 128, 8
    $region49: #{tpu_custom_call.1} parent=1 // pred_fallthru
      _
    // Predicated region
    $region50: #{tpu_custom_call.1} parent=1 // pred_check
      _
    $region51: #{tpu_custom_call.1} parent=1 // pred_check_branch
      %708 = sbr.rel (0) target = $region53
    $region52: #{tpu_custom_call.1} parent=1 // pred_region
      %710 = dma.done [#allocation7], 256
    $region53: #{tpu_custom_call.1} parent=1 // pred_fallthru
      _
    %711 = vsyncpa [#allocation6], 1
    %712 = vsyncpa [#allocation9], 1
    %713 = vsyncpa [#allocation12], 1
    %714 = vsyncpa [#allocation7], 1

</llo_original>
